<compile_context>
chip_gen: v5e
topology: v5e:2x2
jax: 0.10.0
libtpu: 0.0.40
codegen_flags: <defaults>
</compile_context>

<pallas_src>
import jax
import jax.numpy as jnp
from jax.experimental import pallas as pl
from jax.experimental.pallas import tpu as pltpu

_LANE = 128                        # vreg lane width: feature dims pad to this
_BATCH_ALIGN = 16                  # bf16 sublane packing (16, 128)
_MIN_SPLIT = 256                   # min rows/tile worth splitting for megacore
_VMEM_BUDGET = 20 * 1024 * 1024    # keep tiles well under 32 MiB scoped default


def _round_up(n, m):
    return ((n + m - 1) // m) * m


def _pad2(a, rows, cols):
    if rows == 0 and cols == 0:
        return a
    return jnp.pad(a, ((0, rows), (0, cols)))


# ---------------------------------------------------------------------------
# Kernel
# ---------------------------------------------------------------------------
def _mlp_kernel(x_ref, w1_ref, b1_ref, w2_ref, b2_ref, o_ref):
    # Cast x to the MXU input dtype IN-REGISTER (x stays f32 in HBM, so the
    # wrapper does not spend an extra HBM read+write pass casting it).
    x = x_ref[...].astype(w1_ref.dtype)
    # layer_input: x @ W1 (MXU, f32 accumulate), bias add in f32 (VPU).
    h = jnp.dot(x, w1_ref[...], preferred_element_type=jnp.float32)
    h = h + b1_ref[...]
    # dropout (eval/inference mode) == identity, then ReLU.
    h = jnp.maximum(h, 0.0)
    # layer_hidden: h @ W2 + b2.
    out = jnp.dot(h.astype(w2_ref.dtype), w2_ref[...],
                  preferred_element_type=jnp.float32)
    out = out + b2_ref[...]
    o_ref[...] = out.astype(o_ref.dtype)


# ---------------------------------------------------------------------------
# Parameter preparation (do ONCE; padded/cast weights are cached by caller)
# ---------------------------------------------------------------------------
def prepare_mlp_iqvia_params(w1, b1, w2, b2, *, param_dtype=jnp.bfloat16):
    """Pad feature dims to multiples of 128 and cast weights to the MXU dtype.

    w1 : (dim_in, dim_hidden)   -- transposed torch layer_input.weight
    b1 : (dim_hidden,) or (1, dim_hidden)
    w2 : (dim_hidden, dim_out)  -- transposed torch layer_hidden.weight
    b2 : (dim_out,) or (1, dim_out)
    """
    dim_in, dim_hidden = w1.shape
    dh2, dim_out = w2.shape
    assert dh2 == dim_hidden

    din_p = _round_up(dim_in, _LANE)
    dh_p = _round_up(dim_hidden, _LANE)
    dout_p = _round_up(dim_out, _LANE)

    w1_p = _pad2(jnp.asarray(w1, dtype=param_dtype),
                 din_p - dim_in, dh_p - dim_hidden)
    w2_p = _pad2(jnp.asarray(w2, dtype=param_dtype),
                 dh_p - dim_hidden, dout_p - dim_out)
    b1_p = _pad2(jnp.asarray(b1, dtype=jnp.float32).reshape(1, dim_hidden),
                 0, dh_p - dim_hidden)
    b2_p = _pad2(jnp.asarray(b2, dtype=jnp.float32).reshape(1, dim_out),
                 0, dout_p - dim_out)

    return dict(w1=w1_p, b1=b1_p, w2=w2_p, b2=b2_p,
                dim_in=dim_in, dim_hidden=dim_hidden, dim_out=dim_out)


# ---------------------------------------------------------------------------
# Batch tile selection
# ---------------------------------------------------------------------------
def _choose_batch_tile(B, block_b, din_p, dh_p, dout_p,
                       x_itemsize, out_itemsize, param_itemsize):
    """Pick (rows per grid step, padded batch)."""
    b_min = _round_up(max(B, 1), _BATCH_ALIGN)
    block_b = max(_BATCH_ALIGN, _round_up(block_b, _BATCH_ALIGN))

    # VMEM cap: double-buffered x/out tiles + f32 intermediate activation +
    # (worst-case double-buffered) resident weights must stay under budget.
    weight_bytes = 2 * ((din_p * dh_p + dh_p * dout_p) * param_itemsize
                        + (dh_p + dout_p) * 4)
    row_bytes = 2 * din_p * x_itemsize + 2 * dout_p * out_itemsize + dh_p * 4
    max_rows = (_VMEM_BUDGET - weight_bytes) // max(row_bytes, 1)
    max_rows = max(_BATCH_ALIGN, (max_rows // _BATCH_ALIGN) * _BATCH_ALIGN)
    block_b = min(block_b, max_rows)

    if b_min <= block_b:
        # One tile covers the whole batch.  If it is big enough, split it in
        # two so ("parallel",) can shard the grid across v7x's 2 TensorCores
        # (grid=(1,) would leave one core idle).
        if b_min >= 2 * _MIN_SPLIT:
            tb = _round_up(pl.cdiv(b_min, 2), _BATCH_ALIGN)
            return tb, 2 * tb
        return b_min, b_min

    # Large batch: pick among a few tile sizes the one minimizing padding
    # waste (garbage rows computed + written to HBM), tie-break to the larger
    # tile (fewer ~0.35 us grid-step overheads).
    cands = {block_b}
    for t in (1024, 512, 256):
        if _BATCH_ALIGN <= t <= block_b:
            cands.add(t)
    best = None
    for t in sorted(cands, reverse=True):
        b_pad = _round_up(b_min, t)
        key = (b_pad, -t)
        if best is None or key < best[0]:
            best = (key, t, b_pad)
    return best[1], best[2]


# ---------------------------------------------------------------------------
# Forward
# ---------------------------------------------------------------------------
def mlp_iqvia_forward(x, params, *, block_b=1024, out_dtype=None,
                      single_buffer_weights=None):
    """Fused MLP forward.  `params` comes from prepare_mlp_iqvia_params."""
    B, dim_in = x.shape
    assert dim_in == params["dim_in"]
    dim_out = params["dim_out"]
    w1_p, b1_p, w2_p, b2_p = params["w1"], params["b1"], params["w2"], params["b2"]
    din_p, dh_p = w1_p.shape
    dout_p = w2_p.shape[1]
    out_dtype = x.dtype if out_dtype is None else out_dtype

    tb, b_pad = _choose_batch_tile(
        B, block_b, din_p, dh_p, dout_p,
        x.dtype.itemsize, jnp.dtype(out_dtype).itemsize,
        w1_p.dtype.itemsize)

    # Only the batch/feature padding of x is done per call (no dtype cast).
    x_p = _pad2(x, b_pad - B, din_p - dim_in)

    flops = 2 * b_pad * (din_p * dh_p + dh_p * dout_p)
    bytes_accessed = (x_p.size * x_p.dtype.itemsize
                      + w1_p.size * w1_p.dtype.itemsize
                      + w2_p.size * w2_p.dtype.itemsize
                      + b1_p.size * b1_p.dtype.itemsize
                      + b2_p.size * b2_p.dtype.itemsize
                      + b_pad * dout_p * jnp.dtype(out_dtype).itemsize)

    def _call(single_buffer):
        # Weights/biases have a constant index_map -> VMEM-resident across all
        # grid steps; single-buffer them to halve their VMEM footprint.
        wkw = ({"pipeline_mode": pl.Buffered(buffer_count=1)}
               if single_buffer else {})
        in_specs = [
            pl.BlockSpec((tb, din_p), lambda i: (i, 0)),            # x (tiled)
            pl.BlockSpec((din_p, dh_p), lambda i: (0, 0), **wkw),   # W1
            pl.BlockSpec((1, dh_p), lambda i: (0, 0), **wkw),       # b1
            pl.BlockSpec((dh_p, dout_p), lambda i: (0, 0), **wkw),  # W2
            pl.BlockSpec((1, dout_p), lambda i: (0, 0), **wkw),     # b2
        ]
        return pl.pallas_call(
            _mlp_kernel,
            out_shape=jax.ShapeDtypeStruct((b_pad, dout_p), out_dtype),
            grid=(b_pad // tb,),
            in_specs=in_specs,
            out_specs=pl.BlockSpec((tb, dout_p), lambda i: (i, 0)),
            compiler_params=pltpu.CompilerParams(
                dimension_semantics=("parallel",)),
            cost_estimate=pl.CostEstimate(
                flops=flops, transcendentals=0,
                bytes_accessed=bytes_accessed),
        )(x_p, w1_p, b1_p, w2_p, b2_p)

    if single_buffer_weights is None:
        try:
            out_p = _call(True)
        except Exception:
            # pipeline_mode=Buffered(1) not supported by this JAX/Mosaic build:
            # fall back to default double-buffering (correctness unaffected).
            out_p = _call(False)
    else:
        out_p = _call(bool(single_buffer_weights))

    # Skip the trailing slice copy when no padding was added.
    if b_pad == B and dout_p == dim_out:
        return out_p
    return out_p[:B, :dim_out]


# ---------------------------------------------------------------------------
# Demo / self-test
# ---------------------------------------------------------------------------
def _init_linear(key, fan_in, fan_out, dtype=jnp.float32):
    """Deterministic init mimicking torch.nn.Linear (uniform +-1/sqrt(fan_in)).

    Returns W as (fan_in, fan_out) (already transposed) and b as (1, fan_out).
    """
    kw, kb = jax.random.split(key)
    bound = 1.0 / jnp.sqrt(jnp.asarray(fan_in, dtype))
    w = jax.random.uniform(kw, (fan_in, fan_out), dtype, -bound, bound)
    b = jax.random.uniform(kb, (1, fan_out), dtype, -bound, bound)
    return w, b


if __name__ == "__main__":
    # Small shapes implied by the module: flat feature vectors.
    batch, dim_in, dim_hidden, dim_out = 8, 32, 64, 16

    key = jax.random.PRNGKey(0)
    kx, k1, k2 = jax.random.split(key, 3)

    x = jax.random.normal(kx, (batch, dim_in), jnp.float32)
    w1, b1 = _init_linear(k1, dim_in, dim_hidden)
    w2, b2 = _init_linear(k2, dim_hidden, dim_out)

    # Pad/cast the weights once (cached across forward calls).
    params = prepare_mlp_iqvia_params(w1, b1, w2, b2)

    out = mlp_iqvia_forward(x, params)
    out = jax.block_until_ready(out)
    assert out.shape == (batch, dim_out)

    # Reference matching the kernel's bf16-input / f32-accumulate math
    # (dropout = identity in eval mode).
    xb = x.astype(jnp.bfloat16)
    w1b = w1.astype(jnp.bfloat16)
    w2b = w2.astype(jnp.bfloat16)
    h_ref = jnp.dot(xb, w1b, preferred_element_type=jnp.float32) + b1
    h_ref = jnp.maximum(h_ref, 0.0)
    ref = jnp.dot(h_ref.astype(jnp.bfloat16), w2b,
                  preferred_element_type=jnp.float32) + b2
    assert jnp.allclose(out, ref, atol=2e-3, rtol=2e-3)

    # Sanity check against the full-f32 reference at bf16-level tolerance.
    ref_f32 = jnp.maximum(x @ w1 + b1, 0.0) @ w2 + b2
    assert jnp.allclose(out, ref_f32, atol=5e-2, rtol=5e-2)

    print("KERNEL_OK")
</pallas_src>

<mosaic_0001>
module attributes {stable_mosaic.version = 11 : i64} {
  func.func @_mlp_kernel(%arg0: i32, %arg1: memref<16x128xf32, #tpu.memory_space<vmem>>, %arg2: memref<128x128xbf16, #tpu.memory_space<vmem>>, %arg3: memref<1x128xf32, #tpu.memory_space<vmem>>, %arg4: memref<128x128xbf16, #tpu.memory_space<vmem>>, %arg5: memref<1x128xf32, #tpu.memory_space<vmem>>, %arg6: memref<16x128xf32, #tpu.memory_space<vmem>>) attributes {dimension_semantics = [#tpu.dimension_semantics<parallel>], iteration_bounds = array<i64: 1>, scalar_prefetch = 0 : i64, scratch_operands = 0 : i64, tpu.core_type = #tpu.core_type<tc>, window_params = [{transform_indices = @transform_0, window_bounds = array<i64: 16, 128>}, {pipeline_mode = #tpu.pipeline_mode<synchronous>, transform_indices = @transform_1, window_bounds = array<i64: 128, 128>}, {pipeline_mode = #tpu.pipeline_mode<synchronous>, transform_indices = @transform_2, window_bounds = array<i64: 1, 128>}, {pipeline_mode = #tpu.pipeline_mode<synchronous>, transform_indices = @transform_3, window_bounds = array<i64: 128, 128>}, {pipeline_mode = #tpu.pipeline_mode<synchronous>, transform_indices = @transform_4, window_bounds = array<i64: 1, 128>}, {transform_indices = @transform_5, window_bounds = array<i64: 16, 128>}]} {
    %c0 = arith.constant 0 : index
    %c0_0 = arith.constant 0 : index
    %0 = vector.load %arg1[%c0, %c0_0] : memref<16x128xf32, #tpu.memory_space<vmem>>, vector<16x128xf32>
    %1 = arith.truncf %0 : vector<16x128xf32> to vector<16x128xbf16>
    %c0_1 = arith.constant 0 : index
    %c0_2 = arith.constant 0 : index
    %2 = vector.load %arg2[%c0_1, %c0_2] : memref<128x128xbf16, #tpu.memory_space<vmem>>, vector<128x128xbf16>
    %cst = arith.constant dense<0.000000e+00> : vector<16x128xf32>
    %3 = tpu.matmul %1, %2, %cst {dimension_numbers = #tpu.dot_dimension_numbers<[1], [0], [0], [1], [0, 0, 1, 1], [], []>} : vector<16x128xbf16>, vector<128x128xbf16>, vector<16x128xf32> -> vector<16x128xf32>
    %c0_3 = arith.constant 0 : index
    %c0_4 = arith.constant 0 : index
    %4 = vector.load %arg3[%c0_3, %c0_4] : memref<1x128xf32, #tpu.memory_space<vmem>>, vector<1x128xf32>
    %5 = vector.broadcast %4 : vector<1x128xf32> to vector<16x128xf32>
    %6 = arith.addf %3, %5 : vector<16x128xf32>
    %cst_5 = arith.constant 0.000000e+00 : f32
    %7 = vector.broadcast %cst_5 : f32 to vector<16x128xf32>
    %8 = arith.maximumf %6, %7 : vector<16x128xf32>
    %9 = arith.truncf %8 : vector<16x128xf32> to vector<16x128xbf16>
    %c0_6 = arith.constant 0 : index
    %c0_7 = arith.constant 0 : index
    %10 = vector.load %arg4[%c0_6, %c0_7] : memref<128x128xbf16, #tpu.memory_space<vmem>>, vector<128x128xbf16>
    %cst_8 = arith.constant dense<0.000000e+00> : vector<16x128xf32>
    %11 = tpu.matmul %9, %10, %cst_8 {dimension_numbers = #tpu.dot_dimension_numbers<[1], [0], [0], [1], [0, 0, 1, 1], [], []>} : vector<16x128xbf16>, vector<128x128xbf16>, vector<16x128xf32> -> vector<16x128xf32>
    %c0_9 = arith.constant 0 : index
    %c0_10 = arith.constant 0 : index
    %12 = vector.load %arg5[%c0_9, %c0_10] : memref<1x128xf32, #tpu.memory_space<vmem>>, vector<1x128xf32>
    %13 = vector.broadcast %12 : vector<1x128xf32> to vector<16x128xf32>
    %14 = arith.addf %11, %13 : vector<16x128xf32>
    %c0_11 = arith.constant 0 : index
    %c0_12 = arith.constant 0 : index
    %15 = vector.load %arg6[%c0_11, %c0_12] : memref<16x128xf32, #tpu.memory_space<vmem>>, vector<16x128xf32>
    tpu.vector_store %arg6[%c0_11, %c0_12], %14 {strides = array<i32>} : memref<16x128xf32, #tpu.memory_space<vmem>>, vector<16x128xf32>,
    return
  }
  func.func @transform_0(%arg0: i32) -> (i32, i32) {
    %c0_i32 = arith.constant 0 : i32
    %c0_i32_0 = arith.constant 0 : i32
    return %arg0, %c0_i32 : i32, i32
  }
  func.func @transform_1(%arg0: i32) -> (i32, i32) {
    %c0_i32 = arith.constant 0 : i32
    %c0_i32_0 = arith.constant 0 : i32
    %c0_i32_1 = arith.constant 0 : i32
    return %c0_i32, %c0_i32_0 : i32, i32
  }
  func.func @transform_2(%arg0: i32) -> (i32, i32) {
    %c0_i32 = arith.constant 0 : i32
    %c0_i32_0 = arith.constant 0 : i32
    %c0_i32_1 = arith.constant 0 : i32
    return %c0_i32, %c0_i32_0 : i32, i32
  }
  func.func @transform_3(%arg0: i32) -> (i32, i32) {
    %c0_i32 = arith.constant 0 : i32
    %c0_i32_0 = arith.constant 0 : i32
    %c0_i32_1 = arith.constant 0 : i32
    return %c0_i32, %c0_i32_0 : i32, i32
  }
  func.func @transform_4(%arg0: i32) -> (i32, i32) {
    %c0_i32 = arith.constant 0 : i32
    %c0_i32_0 = arith.constant 0 : i32
    %c0_i32_1 = arith.constant 0 : i32
    return %c0_i32, %c0_i32_0 : i32, i32
  }
  func.func @transform_5(%arg0: i32) -> (i32, i32) {
    %c0_i32 = arith.constant 0 : i32
    %c0_i32_0 = arith.constant 0 : i32
    return %arg0, %c0_i32 : i32, i32
  }
}

module attributes {stable_mosaic.version = 11 : i64} {
  func.func @_mlp_kernel(%arg0: i32, %arg1: memref<16x128xf32, #tpu.memory_space<vmem>>, %arg2: memref<128x128xbf16, #tpu.memory_space<vmem>>, %arg3: memref<1x128xf32, #tpu.memory_space<vmem>>, %arg4: memref<128x128xbf16, #tpu.memory_space<vmem>>, %arg5: memref<1x128xf32, #tpu.memory_space<vmem>>, %arg6: memref<16x128xf32, #tpu.memory_space<vmem>>) attributes {dimension_semantics = [#tpu.dimension_semantics<parallel>], iteration_bounds = array<i64: 1>, scalar_prefetch = 0 : i64, scratch_operands = 0 : i64, tpu.core_type = #tpu.core_type<tc>, window_params = [{transform_indices = @transform_0, window_bounds = array<i64: 16, 128>}, {pipeline_mode = #tpu.pipeline_mode<synchronous>, transform_indices = @transform_1, window_bounds = array<i64: 128, 128>}, {pipeline_mode = #tpu.pipeline_mode<synchronous>, transform_indices = @transform_2, window_bounds = array<i64: 1, 128>}, {pipeline_mode = #tpu.pipeline_mode<synchronous>, transform_indices = @transform_3, window_bounds = array<i64: 128, 128>}, {pipeline_mode = #tpu.pipeline_mode<synchronous>, transform_indices = @transform_4, window_bounds = array<i64: 1, 128>}, {transform_indices = @transform_5, window_bounds = array<i64: 16, 128>}]} {
    %c0 = arith.constant 0 : index
    %c0_0 = arith.constant 0 : index
    %0 = vector.load %arg1[%c0, %c0_0] : memref<16x128xf32, #tpu.memory_space<vmem>>, vector<16x128xf32>
    %1 = arith.truncf %0 : vector<16x128xf32> to vector<16x128xbf16>
    %c0_1 = arith.constant 0 : index
    %c0_2 = arith.constant 0 : index
    %2 = vector.load %arg2[%c0_1, %c0_2] : memref<128x128xbf16, #tpu.memory_space<vmem>>, vector<128x128xbf16>
    %cst = arith.constant dense<0.000000e+00> : vector<16x128xf32>
    %3 = tpu.matmul %1, %2, %cst {dimension_numbers = #tpu.dot_dimension_numbers<[1], [0], [0], [1], [0, 0, 1, 1], [], []>} : vector<16x128xbf16>, vector<128x128xbf16>, vector<16x128xf32> -> vector<16x128xf32>
    %c0_3 = arith.constant 0 : index
    %c0_4 = arith.constant 0 : index
    %4 = vector.load %arg3[%c0_3, %c0_4] : memref<1x128xf32, #tpu.memory_space<vmem>>, vector<1x128xf32>
    %5 = vector.broadcast %4 : vector<1x128xf32> to vector<16x128xf32>
    %6 = arith.addf %3, %5 : vector<16x128xf32>
    %cst_5 = arith.constant 0.000000e+00 : f32
    %7 = vector.broadcast %cst_5 : f32 to vector<16x128xf32>
    %8 = arith.maximumf %6, %7 : vector<16x128xf32>
    %9 = arith.truncf %8 : vector<16x128xf32> to vector<16x128xbf16>
    %c0_6 = arith.constant 0 : index
    %c0_7 = arith.constant 0 : index
    %10 = vector.load %arg4[%c0_6, %c0_7] : memref<128x128xbf16, #tpu.memory_space<vmem>>, vector<128x128xbf16>
    %cst_8 = arith.constant dense<0.000000e+00> : vector<16x128xf32>
    %11 = tpu.matmul %9, %10, %cst_8 {dimension_numbers = #tpu.dot_dimension_numbers<[1], [0], [0], [1], [0, 0, 1, 1], [], []>} : vector<16x128xbf16>, vector<128x128xbf16>, vector<16x128xf32> -> vector<16x128xf32>
    %c0_9 = arith.constant 0 : index
    %c0_10 = arith.constant 0 : index
    %12 = vector.load %arg5[%c0_9, %c0_10] : memref<1x128xf32, #tpu.memory_space<vmem>>, vector<1x128xf32>
    %13 = vector.broadcast %12 : vector<1x128xf32> to vector<16x128xf32>
    %14 = arith.addf %11, %13 : vector<16x128xf32>
    %c0_11 = arith.constant 0 : index
    %c0_12 = arith.constant 0 : index
    %15 = vector.load %arg6[%c0_11, %c0_12] : memref<16x128xf32, #tpu.memory_space<vmem>>, vector<16x128xf32>
    tpu.vector_store %arg6[%c0_11, %c0_12], %14 {strides = array<i32>} : memref<16x128xf32, #tpu.memory_space<vmem>>, vector<16x128xf32>,
    return
  }
  func.func @transform_0(%arg0: i32) -> (i32, i32) {
    %c0_i32 = arith.constant 0 : i32
    %c0_i32_0 = arith.constant 0 : i32
    return %arg0, %c0_i32 : i32, i32
  }
  func.func @transform_1(%arg0: i32) -> (i32, i32) {
    %c0_i32 = arith.constant 0 : i32
    %c0_i32_0 = arith.constant 0 : i32
    %c0_i32_1 = arith.constant 0 : i32
    return %c0_i32, %c0_i32_0 : i32, i32
  }
  func.func @transform_2(%arg0: i32) -> (i32, i32) {
    %c0_i32 = arith.constant 0 : i32
    %c0_i32_0 = arith.constant 0 : i32
    %c0_i32_1 = arith.constant 0 : i32
    return %c0_i32, %c0_i32_0 : i32, i32
  }
  func.func @transform_3(%arg0: i32) -> (i32, i32) {
    %c0_i32 = arith.constant 0 : i32
    %c0_i32_0 = arith.constant 0 : i32
    %c0_i32_1 = arith.constant 0 : i32
    return %c0_i32, %c0_i32_0 : i32, i32
  }
  func.func @transform_4(%arg0: i32) -> (i32, i32) {
    %c0_i32 = arith.constant 0 : i32
    %c0_i32_0 = arith.constant 0 : i32
    %c0_i32_1 = arith.constant 0 : i32
    return %c0_i32, %c0_i32_0 : i32, i32
  }
  func.func @transform_5(%arg0: i32) -> (i32, i32) {
    %c0_i32 = arith.constant 0 : i32
    %c0_i32_0 = arith.constant 0 : i32
    return %arg0, %c0_i32 : i32, i32
  }
}

</mosaic_0001>

<llo_original>
// kernel: tpu_custom_call.1
$region0: #{tpu_custom_call.1}
  #allocation0 [shape = 'u32[]', space=smem, size = 0x4, offset = 0x4, fixed_abs, tag = 'smem constant byte address 0x4 - core index']
  #allocation1 [shape = 'u32[72,128]{1,0:T(1,128)}', space=vmem, size = 0x9000, scoped, tag = 'internal scratch']
  %s0 = inlined_call_operand.hbm [shape: f32[16,128], index: 0, kind: input, shape index: {}]
  %s1 = inlined_call_operand.hbm [shape: bf16[128,128], index: 1, kind: input, shape index: {}]
  %s2 = inlined_call_operand.vmem [shape: f32[1,128], index: 2, kind: input, shape index: {}]
  %s3 = inlined_call_operand.hbm [shape: bf16[128,128], index: 3, kind: input, shape index: {}]
  %s4 = inlined_call_operand.vmem [shape: f32[1,128], index: 4, kind: input, shape index: {}]
  %s5 = inlined_call_operand.hbm [shape: f32[16,128], index: 5, kind: output, shape index: {}]
  %s6 = sld [smem:[#allocation0]]
  $region42: #{tpu_custom_call.1} parent=0
    _
  %s8 = ssub.s32 1, %s6
  %s9 = scalar_select 0, %s8, %s6
  $region1: #{tpu_custom_call.1} parent=0
    #allocation2 [shape = 'u8[8192]{0}', space=vmem, size = 0x2000, scoped, tag = 'input window, operand 0, single buffered']
    #allocation3 [shape = 's32[1]{0}', space=sflag, size = 0x4, scoped, tag = 'scoped memory for tpu_custom_call.1']
    #allocation4 [shape = 's32[1]{0}', space=sflag, size = 0x4, scoped, tag = 'scoped memory for tpu_custom_call.1']
    #allocation5 [shape = 'u8[32768]{0}', space=vmem, size = 0x8000, scoped, tag = 'input window, operand 1, single buffered']
    #allocation6 [shape = 's32[1]{0}', space=sflag, size = 0x4, scoped, tag = 'scoped memory for tpu_custom_call.1']
    #allocation7 [shape = 'u8[32768]{0}', space=vmem, size = 0x8000, scoped, tag = 'input window, operand 3, single buffered']
    #allocation8 [shape = 'u8[8192]{0}', space=vmem, size = 0x2000, scoped, tag = 'output window, operand 0, single buffered']
    %10 = vsyncpa [#allocation3], 0
    %11 = vsyncpa [#allocation6], 0
    %12 = vsyncpa [#allocation4], 0
    // Predicated region
    $region2: #{tpu_custom_call.1} parent=1 // pred_check
      _
    $region3: #{tpu_custom_call.1} parent=1 // pred_check_branch
      %14 = sbr.rel (0) target = $region5
    $region4: #{tpu_custom_call.1} parent=1 // pred_region
      %16 = vsyncadd [#allocation3], 0
      %s17 = sshll.u32 %s0, 4
      %s18 = int_to_ptr.hbm [resolvable:$true] %s17
      %s19 = sshll.u32 [#allocation2], 4
      %s20 = int_to_ptr.vmem [resolvable:$true] %s19
      %25 = dma.hbm_to_vmem [thread:$0]  %s18, 256, %s20, [#allocation3], 128, 128, 8
    $region5: #{tpu_custom_call.1} parent=1 // pred_fallthru
      _
    // Predicated region
    $region6: #{tpu_custom_call.1} parent=1 // pred_check
      _
    $region7: #{tpu_custom_call.1} parent=1 // pred_check_branch
      %27 = sbr.rel (0) target = $region9
    $region8: #{tpu_custom_call.1} parent=1 // pred_region
      %29 = vsyncadd [#allocation6], 0
      %s30 = sshll.u32 %s1, 4
      %s31 = int_to_ptr.hbm [resolvable:$true] %s30
      %s32 = sshll.u32 [#allocation5], 4
      %s33 = int_to_ptr.vmem [resolvable:$true] %s32
      %38 = dma.hbm_to_vmem [thread:$0]  %s31, 1024, %s33, [#allocation6], 64, 64, 4
    $region9: #{tpu_custom_call.1} parent=1 // pred_fallthru
      _
    // Predicated region
    $region10: #{tpu_custom_call.1} parent=1 // pred_check
      _
    $region11: #{tpu_custom_call.1} parent=1 // pred_check_branch
      %40 = sbr.rel (0) target = $region13
    $region12: #{tpu_custom_call.1} parent=1 // pred_region
      _
    $region13: #{tpu_custom_call.1} parent=1 // pred_fallthru
      _
    // Predicated region
    $region14: #{tpu_custom_call.1} parent=1 // pred_check
      _
    $region15: #{tpu_custom_call.1} parent=1 // pred_check_branch
      %42 = sbr.rel (0) target = $region17
    $region16: #{tpu_custom_call.1} parent=1 // pred_region
      %44 = vsyncadd [#allocation6], 0
      %s45 = sshll.u32 %s3, 4
      %s46 = int_to_ptr.hbm [resolvable:$true] %s45
      %s47 = sshll.u32 [#allocation7], 4
      %s48 = int_to_ptr.vmem [resolvable:$true] %s47
      %53 = dma.hbm_to_vmem [thread:$0]  %s46, 1024, %s48, [#allocation6], 64, 64, 4
    $region17: #{tpu_custom_call.1} parent=1 // pred_fallthru
      _
    // Predicated region
    $region18: #{tpu_custom_call.1} parent=1 // pred_check
      _
    $region19: #{tpu_custom_call.1} parent=1 // pred_check_branch
      %55 = sbr.rel (0) target = $region21
    $region20: #{tpu_custom_call.1} parent=1 // pred_region
      _
    $region21: #{tpu_custom_call.1} parent=1 // pred_fallthru
      _
    // Predicated region
    $region22: #{tpu_custom_call.1} parent=1 // pred_check
      _
    $region23: #{tpu_custom_call.1} parent=1 // pred_check_branch
      %57 = sbr.rel (0) target = $region25
    $region24: #{tpu_custom_call.1} parent=1 // pred_region
      %59 = dma.done [#allocation3], 256
    $region25: #{tpu_custom_call.1} parent=1 // pred_fallthru
      _
    // Predicated region
    $region26: #{tpu_custom_call.1} parent=1 // pred_check
      _
    $region27: #{tpu_custom_call.1} parent=1 // pred_check_branch
      %61 = sbr.rel (0) target = $region29
    $region28: #{tpu_custom_call.1} parent=1 // pred_region
      %63 = dma.done [#allocation6], 1024
    $region29: #{tpu_custom_call.1} parent=1 // pred_fallthru
      _
    // Predicated region
    $region30: #{tpu_custom_call.1} parent=1 // pred_check
      _
    $region31: #{tpu_custom_call.1} parent=1 // pred_check_branch
      %65 = sbr.rel (0) target = $region33
    $region32: #{tpu_custom_call.1} parent=1 // pred_region
      %67 = dma.done [#allocation6], 1024
    $region33: #{tpu_custom_call.1} parent=1 // pred_fallthru
      _
    %v68 = vld [vmem:[#allocation2] sm:$0xff]
    %v69 = vld [vmem:[#allocation2 + $0x8] sm:$0xff]
    %v70 = vpack.c.bf16 %v69, %v68
    %v71 = vld [vmem:[#allocation5] sm:$0xf]
    %v72 = vld [vmem:[#allocation5 + $0x4] sm:$0xf]
    %v73 = vld [vmem:[#allocation5 + $0x8] sm:$0xf]
    %v74 = vld [vmem:[#allocation5 + $0xc] sm:$0xf]
    %v75 = vld [vmem:[#allocation5 + $0x10] sm:$0xf]
    %v76 = vld [vmem:[#allocation5 + $0x14] sm:$0xf]
    %v77 = vld [vmem:[#allocation5 + $0x18] sm:$0xf]
    %v78 = vld [vmem:[#allocation5 + $0x1c] sm:$0xf]
    %v79 = vld [vmem:[#allocation5 + $0x20] sm:$0xf]
    %v80 = vld [vmem:[#allocation5 + $0x24] sm:$0xf]
    %v81 = vld [vmem:[#allocation5 + $0x28] sm:$0xf]
    %v82 = vld [vmem:[#allocation5 + $0x2c] sm:$0xf]
    %v83 = vld [vmem:[#allocation5 + $0x30] sm:$0xf]
    %v84 = vld [vmem:[#allocation5 + $0x34] sm:$0xf]
    %v85 = vld [vmem:[#allocation5 + $0x38] sm:$0xf]
    %v86 = vld [vmem:[#allocation5 + $0x3c] sm:$0xf]
    %v87 = vld [vmem:[%s2] sm:$0x1]
    %v89 = vperm.slane %v87, 0
    %v107 = vunpack.c.l.b16 %v71
    %v108 = vunpack.c.l.b16 %v72
    %v109 = vunpack.c.l.b16 %v73
    %v110 = vunpack.c.l.b16 %v74
    %v111 = vunpack.c.l.b16 %v75
    %v112 = vunpack.c.l.b16 %v76
    %v113 = vunpack.c.l.b16 %v77
    %v114 = vunpack.c.l.b16 %v78
    %v115 = vunpack.c.l.b16 %v79
    %v116 = vunpack.c.l.b16 %v80
    %v117 = vunpack.c.l.b16 %v81
    %v118 = vunpack.c.l.b16 %v82
    %v119 = vunpack.c.l.b16 %v83
    %v120 = vunpack.c.l.b16 %v84
    %v121 = vunpack.c.l.b16 %v85
    %v122 = vunpack.c.l.b16 %v86
    %v123 = vpack.c.b16 %v108, %v107
    %v124 = vpack.c.b16 %v110, %v109
    %v125 = vpack.c.b16 %v112, %v111
    %v126 = vpack.c.b16 %v114, %v113
    %v127 = vpack.c.b16 %v116, %v115
    %v128 = vpack.c.b16 %v118, %v117
    %v129 = vpack.c.b16 %v120, %v119
    %v130 = vpack.c.b16 %v122, %v121
    %139 = vmatpush.bf16.msra.mxu0 %v130
    %140 = vmatpush.bf16.msra.mxu0 %v129
    %141 = vmatpush.bf16.msra.mxu0 %v128
    %142 = vmatpush.bf16.msra.mxu0 %v127
    %143 = vmatpush.bf16.msra.mxu0 %v126
    %144 = vmatpush.bf16.msra.mxu0 %v125
    %145 = vmatpush.bf16.msra.mxu0 %v124
    %146 = vmatpush.bf16.msra.mxu0 %v123
    %147 = vmatmul.bf16.gmra.mxu0 %v70
    %v148 = vpop.f32.mrf.mxu0
    %v149 = vadd.f32 %v89, %v148
    %v150 = vpop.f32.mrf.mxu0
    %v151 = vadd.f32 %v89, %v150
    %152 = vdwg.mxu0
    %v153 = vmax.f32 %v149, 0.0
    %v154 = vmax.f32 %v151, 0.0
    %v155 = vpack.c.bf16 %v154, %v153
    %v156 = vld [vmem:[#allocation7] sm:$0xf]
    %v157 = vld [vmem:[#allocation7 + $0x4] sm:$0xf]
    %v158 = vld [vmem:[#allocation7 + $0x8] sm:$0xf]
    %v159 = vld [vmem:[#allocation7 + $0xc] sm:$0xf]
    %v160 = vld [vmem:[#allocation7 + $0x10] sm:$0xf]
    %v161 = vld [vmem:[#allocation7 + $0x14] sm:$0xf]
    %v162 = vld [vmem:[#allocation7 + $0x18] sm:$0xf]
    %v163 = vld [vmem:[#allocation7 + $0x1c] sm:$0xf]
    %v164 = vld [vmem:[#allocation7 + $0x20] sm:$0xf]
    %v165 = vld [vmem:[#allocation7 + $0x24] sm:$0xf]
    %v166 = vld [vmem:[#allocation7 + $0x28] sm:$0xf]
    %v167 = vld [vmem:[#allocation7 + $0x2c] sm:$0xf]
    %v168 = vld [vmem:[#allocation7 + $0x30] sm:$0xf]
    %v169 = vld [vmem:[#allocation7 + $0x34] sm:$0xf]
    %v170 = vld [vmem:[#allocation7 + $0x38] sm:$0xf]
    %v171 = vld [vmem:[#allocation7 + $0x3c] sm:$0xf]
    %v172 = vld [vmem:[%s4] sm:$0x1]
    %v174 = vperm.slane %v172, 0
    %v192 = vunpack.c.l.b16 %v156
    %v193 = vunpack.c.l.b16 %v157
    %v194 = vunpack.c.l.b16 %v158
    %v195 = vunpack.c.l.b16 %v159
    %v196 = vunpack.c.l.b16 %v160
    %v197 = vunpack.c.l.b16 %v161
    %v198 = vunpack.c.l.b16 %v162
    %v199 = vunpack.c.l.b16 %v163
    %v200 = vunpack.c.l.b16 %v164
    %v201 = vunpack.c.l.b16 %v165
    %v202 = vunpack.c.l.b16 %v166
    %v203 = vunpack.c.l.b16 %v167
    %v204 = vunpack.c.l.b16 %v168
    %v205 = vunpack.c.l.b16 %v169
    %v206 = vunpack.c.l.b16 %v170
    %v207 = vunpack.c.l.b16 %v171
    %v208 = vpack.c.b16 %v193, %v192
    %v209 = vpack.c.b16 %v195, %v194
    %v210 = vpack.c.b16 %v197, %v196
    %v211 = vpack.c.b16 %v199, %v198
    %v212 = vpack.c.b16 %v201, %v200
    %v213 = vpack.c.b16 %v203, %v202
    %v214 = vpack.c.b16 %v205, %v204
    %v215 = vpack.c.b16 %v207, %v206
    %224 = vmatpush.bf16.msra.mxu0 %v215
    %225 = vmatpush.bf16.msra.mxu0 %v214
    %226 = vmatpush.bf16.msra.mxu0 %v213
    %227 = vmatpush.bf16.msra.mxu0 %v212
    %228 = vmatpush.bf16.msra.mxu0 %v211
    %229 = vmatpush.bf16.msra.mxu0 %v210
    %230 = vmatpush.bf16.msra.mxu0 %v209
    %231 = vmatpush.bf16.msra.mxu0 %v208
    %232 = vmatmul.bf16.gmra.mxu0 %v155
    %v233 = vpop.f32.mrf.mxu0
    %v234 = vadd.f32 %v174, %v233
    %v235 = vpop.f32.mrf.mxu0
    %v236 = vadd.f32 %v174, %v235
    %237 = vdwg.mxu0
    %238 = vst [vmem:[#allocation8] sm:$0xff] %v234
    %239 = vst [vmem:[#allocation8 + $0x8] sm:$0xff] %v236
    // Predicated region
    $region34: #{tpu_custom_call.1} parent=1 // pred_check
      _
    $region35: #{tpu_custom_call.1} parent=1 // pred_check_branch
      %241 = sbr.rel (0) target = $region37
    $region36: #{tpu_custom_call.1} parent=1 // pred_region
      %243 = vsyncadd [#allocation4], 0
      %s244 = sshll.u32 [#allocation8], 4
      %s245 = int_to_ptr.vmem [resolvable:$true] %s244
      %s246 = sshll.u32 %s5, 4
      %s247 = int_to_ptr.hbm [resolvable:$true] %s246
      %252 = dma.vmem_to_hbm [thread:$0]  %s245, 256, %s247, [#allocation4], 128, 128, 8
    $region37: #{tpu_custom_call.1} parent=1 // pred_fallthru
      _
    // Predicated region
    $region38: #{tpu_custom_call.1} parent=1 // pred_check
      _
    $region39: #{tpu_custom_call.1} parent=1 // pred_check_branch
      %254 = sbr.rel (0) target = $region41
    $region40: #{tpu_custom_call.1} parent=1 // pred_region
      %256 = dma.done [#allocation4], 256
    $region41: #{tpu_custom_call.1} parent=1 // pred_fallthru
      _
    %257 = vsyncpa [#allocation3], 1
    %258 = vsyncpa [#allocation6], 1
    %259 = vsyncpa [#allocation4], 1

// kernel: tpu_custom_call.1
$region0: #{tpu_custom_call.1}
  #allocation0 [shape = 'u32[]', space=smem, size = 0x4, offset = 0x4, fixed_abs, tag = 'smem constant byte address 0x4 - core index']
  #allocation1 [shape = 'u32[72,128]{1,0:T(1,128)}', space=vmem, size = 0x9000, scoped, tag = 'internal scratch']
  %s0 = inlined_call_operand.hbm [shape: f32[16,128], index: 0, kind: input, shape index: {}]
  %s1 = inlined_call_operand.hbm [shape: bf16[128,128], index: 1, kind: input, shape index: {}]
  %s2 = inlined_call_operand.vmem [shape: f32[1,128], index: 2, kind: input, shape index: {}]
  %s3 = inlined_call_operand.hbm [shape: bf16[128,128], index: 3, kind: input, shape index: {}]
  %s4 = inlined_call_operand.vmem [shape: f32[1,128], index: 4, kind: input, shape index: {}]
  %s5 = inlined_call_operand.hbm [shape: f32[16,128], index: 5, kind: output, shape index: {}]
  %s6 = sld [smem:[#allocation0]]
  $region42: #{tpu_custom_call.1} parent=0
    _
  %s8 = ssub.s32 1, %s6
  %s9 = scalar_select 0, %s8, %s6
  $region1: #{tpu_custom_call.1} parent=0
    #allocation2 [shape = 'u8[8192]{0}', space=vmem, size = 0x2000, scoped, tag = 'input window, operand 0, single buffered']
    #allocation3 [shape = 's32[1]{0}', space=sflag, size = 0x4, scoped, tag = 'scoped memory for tpu_custom_call.1']
    #allocation4 [shape = 's32[1]{0}', space=sflag, size = 0x4, scoped, tag = 'scoped memory for tpu_custom_call.1']
    #allocation5 [shape = 'u8[32768]{0}', space=vmem, size = 0x8000, scoped, tag = 'input window, operand 1, single buffered']
    #allocation6 [shape = 's32[1]{0}', space=sflag, size = 0x4, scoped, tag = 'scoped memory for tpu_custom_call.1']
    #allocation7 [shape = 'u8[32768]{0}', space=vmem, size = 0x8000, scoped, tag = 'input window, operand 3, single buffered']
    #allocation8 [shape = 'u8[8192]{0}', space=vmem, size = 0x2000, scoped, tag = 'output window, operand 0, single buffered']
    %10 = vsyncpa [#allocation3], 0
    %11 = vsyncpa [#allocation6], 0
    %12 = vsyncpa [#allocation4], 0
    // Predicated region
    $region2: #{tpu_custom_call.1} parent=1 // pred_check
      _
    $region3: #{tpu_custom_call.1} parent=1 // pred_check_branch
      %14 = sbr.rel (0) target = $region5
    $region4: #{tpu_custom_call.1} parent=1 // pred_region
      %16 = vsyncadd [#allocation3], 0
      %s17 = sshll.u32 %s0, 4
      %s18 = int_to_ptr.hbm [resolvable:$true] %s17
      %s19 = sshll.u32 [#allocation2], 4
      %s20 = int_to_ptr.vmem [resolvable:$true] %s19
      %25 = dma.hbm_to_vmem [thread:$0]  %s18, 256, %s20, [#allocation3], 128, 128, 8
    $region5: #{tpu_custom_call.1} parent=1 // pred_fallthru
      _
    // Predicated region
    $region6: #{tpu_custom_call.1} parent=1 // pred_check
      _
    $region7: #{tpu_custom_call.1} parent=1 // pred_check_branch
      %27 = sbr.rel (0) target = $region9
    $region8: #{tpu_custom_call.1} parent=1 // pred_region
      %29 = vsyncadd [#allocation6], 0
      %s30 = sshll.u32 %s1, 4
      %s31 = int_to_ptr.hbm [resolvable:$true] %s30
      %s32 = sshll.u32 [#allocation5], 4
      %s33 = int_to_ptr.vmem [resolvable:$true] %s32
      %38 = dma.hbm_to_vmem [thread:$0]  %s31, 1024, %s33, [#allocation6], 64, 64, 4
    $region9: #{tpu_custom_call.1} parent=1 // pred_fallthru
      _
    // Predicated region
    $region10: #{tpu_custom_call.1} parent=1 // pred_check
      _
    $region11: #{tpu_custom_call.1} parent=1 // pred_check_branch
      %40 = sbr.rel (0) target = $region13
    $region12: #{tpu_custom_call.1} parent=1 // pred_region
      _
    $region13: #{tpu_custom_call.1} parent=1 // pred_fallthru
      _
    // Predicated region
    $region14: #{tpu_custom_call.1} parent=1 // pred_check
      _
    $region15: #{tpu_custom_call.1} parent=1 // pred_check_branch
      %42 = sbr.rel (0) target = $region17
    $region16: #{tpu_custom_call.1} parent=1 // pred_region
      %44 = vsyncadd [#allocation6], 0
      %s45 = sshll.u32 %s3, 4
      %s46 = int_to_ptr.hbm [resolvable:$true] %s45
      %s47 = sshll.u32 [#allocation7], 4
      %s48 = int_to_ptr.vmem [resolvable:$true] %s47
      %53 = dma.hbm_to_vmem [thread:$0]  %s46, 1024, %s48, [#allocation6], 64, 64, 4
    $region17: #{tpu_custom_call.1} parent=1 // pred_fallthru
      _
    // Predicated region
    $region18: #{tpu_custom_call.1} parent=1 // pred_check
      _
    $region19: #{tpu_custom_call.1} parent=1 // pred_check_branch
      %55 = sbr.rel (0) target = $region21
    $region20: #{tpu_custom_call.1} parent=1 // pred_region
      _
    $region21: #{tpu_custom_call.1} parent=1 // pred_fallthru
      _
    // Predicated region
    $region22: #{tpu_custom_call.1} parent=1 // pred_check
      _
    $region23: #{tpu_custom_call.1} parent=1 // pred_check_branch
      %57 = sbr.rel (0) target = $region25
    $region24: #{tpu_custom_call.1} parent=1 // pred_region
      %59 = dma.done [#allocation3], 256
    $region25: #{tpu_custom_call.1} parent=1 // pred_fallthru
      _
    // Predicated region
    $region26: #{tpu_custom_call.1} parent=1 // pred_check
      _
    $region27: #{tpu_custom_call.1} parent=1 // pred_check_branch
      %61 = sbr.rel (0) target = $region29
    $region28: #{tpu_custom_call.1} parent=1 // pred_region
      %63 = dma.done [#allocation6], 1024
    $region29: #{tpu_custom_call.1} parent=1 // pred_fallthru
      _
    // Predicated region
    $region30: #{tpu_custom_call.1} parent=1 // pred_check
      _
    $region31: #{tpu_custom_call.1} parent=1 // pred_check_branch
      %65 = sbr.rel (0) target = $region33
    $region32: #{tpu_custom_call.1} parent=1 // pred_region
      %67 = dma.done [#allocation6], 1024
    $region33: #{tpu_custom_call.1} parent=1 // pred_fallthru
      _
    %v68 = vld [vmem:[#allocation2] sm:$0xff]
    %v69 = vld [vmem:[#allocation2 + $0x8] sm:$0xff]
    %v70 = vpack.c.bf16 %v69, %v68
    %v71 = vld [vmem:[#allocation5] sm:$0xf]
    %v72 = vld [vmem:[#allocation5 + $0x4] sm:$0xf]
    %v73 = vld [vmem:[#allocation5 + $0x8] sm:$0xf]
    %v74 = vld [vmem:[#allocation5 + $0xc] sm:$0xf]
    %v75 = vld [vmem:[#allocation5 + $0x10] sm:$0xf]
    %v76 = vld [vmem:[#allocation5 + $0x14] sm:$0xf]
    %v77 = vld [vmem:[#allocation5 + $0x18] sm:$0xf]
    %v78 = vld [vmem:[#allocation5 + $0x1c] sm:$0xf]
    %v79 = vld [vmem:[#allocation5 + $0x20] sm:$0xf]
    %v80 = vld [vmem:[#allocation5 + $0x24] sm:$0xf]
    %v81 = vld [vmem:[#allocation5 + $0x28] sm:$0xf]
    %v82 = vld [vmem:[#allocation5 + $0x2c] sm:$0xf]
    %v83 = vld [vmem:[#allocation5 + $0x30] sm:$0xf]
    %v84 = vld [vmem:[#allocation5 + $0x34] sm:$0xf]
    %v85 = vld [vmem:[#allocation5 + $0x38] sm:$0xf]
    %v86 = vld [vmem:[#allocation5 + $0x3c] sm:$0xf]
    %v87 = vld [vmem:[%s2] sm:$0x1]
    %v89 = vperm.slane %v87, 0
    %v107 = vunpack.c.l.b16 %v71
    %v108 = vunpack.c.l.b16 %v72
    %v109 = vunpack.c.l.b16 %v73
    %v110 = vunpack.c.l.b16 %v74
    %v111 = vunpack.c.l.b16 %v75
    %v112 = vunpack.c.l.b16 %v76
    %v113 = vunpack.c.l.b16 %v77
    %v114 = vunpack.c.l.b16 %v78
    %v115 = vunpack.c.l.b16 %v79
    %v116 = vunpack.c.l.b16 %v80
    %v117 = vunpack.c.l.b16 %v81
    %v118 = vunpack.c.l.b16 %v82
    %v119 = vunpack.c.l.b16 %v83
    %v120 = vunpack.c.l.b16 %v84
    %v121 = vunpack.c.l.b16 %v85
    %v122 = vunpack.c.l.b16 %v86
    %v123 = vpack.c.b16 %v108, %v107
    %v124 = vpack.c.b16 %v110, %v109
    %v125 = vpack.c.b16 %v112, %v111
    %v126 = vpack.c.b16 %v114, %v113
    %v127 = vpack.c.b16 %v116, %v115
    %v128 = vpack.c.b16 %v118, %v117
    %v129 = vpack.c.b16 %v120, %v119
    %v130 = vpack.c.b16 %v122, %v121
    %139 = vmatpush.bf16.msra.mxu0 %v130
    %140 = vmatpush.bf16.msra.mxu0 %v129
    %141 = vmatpush.bf16.msra.mxu0 %v128
    %142 = vmatpush.bf16.msra.mxu0 %v127
    %143 = vmatpush.bf16.msra.mxu0 %v126
    %144 = vmatpush.bf16.msra.mxu0 %v125
    %145 = vmatpush.bf16.msra.mxu0 %v124
    %146 = vmatpush.bf16.msra.mxu0 %v123
    %147 = vmatmul.bf16.gmra.mxu0 %v70
    %v148 = vpop.f32.mrf.mxu0
    %v149 = vadd.f32 %v89, %v148
    %v150 = vpop.f32.mrf.mxu0
    %v151 = vadd.f32 %v89, %v150
    %152 = vdwg.mxu0
    %v153 = vmax.f32 %v149, 0.0
    %v154 = vmax.f32 %v151, 0.0
    %v155 = vpack.c.bf16 %v154, %v153
    %v156 = vld [vmem:[#allocation7] sm:$0xf]
    %v157 = vld [vmem:[#allocation7 + $0x4] sm:$0xf]
    %v158 = vld [vmem:[#allocation7 + $0x8] sm:$0xf]
    %v159 = vld [vmem:[#allocation7 + $0xc] sm:$0xf]
    %v160 = vld [vmem:[#allocation7 + $0x10] sm:$0xf]
    %v161 = vld [vmem:[#allocation7 + $0x14] sm:$0xf]
    %v162 = vld [vmem:[#allocation7 + $0x18] sm:$0xf]
    %v163 = vld [vmem:[#allocation7 + $0x1c] sm:$0xf]
    %v164 = vld [vmem:[#allocation7 + $0x20] sm:$0xf]
    %v165 = vld [vmem:[#allocation7 + $0x24] sm:$0xf]
    %v166 = vld [vmem:[#allocation7 + $0x28] sm:$0xf]
    %v167 = vld [vmem:[#allocation7 + $0x2c] sm:$0xf]
    %v168 = vld [vmem:[#allocation7 + $0x30] sm:$0xf]
    %v169 = vld [vmem:[#allocation7 + $0x34] sm:$0xf]
    %v170 = vld [vmem:[#allocation7 + $0x38] sm:$0xf]
    %v171 = vld [vmem:[#allocation7 + $0x3c] sm:$0xf]
    %v172 = vld [vmem:[%s4] sm:$0x1]
    %v174 = vperm.slane %v172, 0
    %v192 = vunpack.c.l.b16 %v156
    %v193 = vunpack.c.l.b16 %v157
    %v194 = vunpack.c.l.b16 %v158
    %v195 = vunpack.c.l.b16 %v159
    %v196 = vunpack.c.l.b16 %v160
    %v197 = vunpack.c.l.b16 %v161
    %v198 = vunpack.c.l.b16 %v162
    %v199 = vunpack.c.l.b16 %v163
    %v200 = vunpack.c.l.b16 %v164
    %v201 = vunpack.c.l.b16 %v165
    %v202 = vunpack.c.l.b16 %v166
    %v203 = vunpack.c.l.b16 %v167
    %v204 = vunpack.c.l.b16 %v168
    %v205 = vunpack.c.l.b16 %v169
    %v206 = vunpack.c.l.b16 %v170
    %v207 = vunpack.c.l.b16 %v171
    %v208 = vpack.c.b16 %v193, %v192
    %v209 = vpack.c.b16 %v195, %v194
    %v210 = vpack.c.b16 %v197, %v196
    %v211 = vpack.c.b16 %v199, %v198
    %v212 = vpack.c.b16 %v201, %v200
    %v213 = vpack.c.b16 %v203, %v202
    %v214 = vpack.c.b16 %v205, %v204
    %v215 = vpack.c.b16 %v207, %v206
    %224 = vmatpush.bf16.msra.mxu0 %v215
    %225 = vmatpush.bf16.msra.mxu0 %v214
    %226 = vmatpush.bf16.msra.mxu0 %v213
    %227 = vmatpush.bf16.msra.mxu0 %v212
    %228 = vmatpush.bf16.msra.mxu0 %v211
    %229 = vmatpush.bf16.msra.mxu0 %v210
    %230 = vmatpush.bf16.msra.mxu0 %v209
    %231 = vmatpush.bf16.msra.mxu0 %v208
    %232 = vmatmul.bf16.gmra.mxu0 %v155
    %v233 = vpop.f32.mrf.mxu0
    %v234 = vadd.f32 %v174, %v233
    %v235 = vpop.f32.mrf.mxu0
    %v236 = vadd.f32 %v174, %v235
    %237 = vdwg.mxu0
    %238 = vst [vmem:[#allocation8] sm:$0xff] %v234
    %239 = vst [vmem:[#allocation8 + $0x8] sm:$0xff] %v236
    // Predicated region
    $region34: #{tpu_custom_call.1} parent=1 // pred_check
      _
    $region35: #{tpu_custom_call.1} parent=1 // pred_check_branch
      %241 = sbr.rel (0) target = $region37
    $region36: #{tpu_custom_call.1} parent=1 // pred_region
      %243 = vsyncadd [#allocation4], 0
      %s244 = sshll.u32 [#allocation8], 4
      %s245 = int_to_ptr.vmem [resolvable:$true] %s244
      %s246 = sshll.u32 %s5, 4
      %s247 = int_to_ptr.hbm [resolvable:$true] %s246
      %252 = dma.vmem_to_hbm [thread:$0]  %s245, 256, %s247, [#allocation4], 128, 128, 8
    $region37: #{tpu_custom_call.1} parent=1 // pred_fallthru
      _
    // Predicated region
    $region38: #{tpu_custom_call.1} parent=1 // pred_check
      _
    $region39: #{tpu_custom_call.1} parent=1 // pred_check_branch
      %254 = sbr.rel (0) target = $region41
    $region40: #{tpu_custom_call.1} parent=1 // pred_region
      %256 = dma.done [#allocation4], 256
    $region41: #{tpu_custom_call.1} parent=1 // pred_fallthru
      _
    %257 = vsyncpa [#allocation3], 1
    %258 = vsyncpa [#allocation6], 1
    %259 = vsyncpa [#allocation4], 1

</llo_original>
